<compile_context>
chip_gen: v6e
topology: v6e:2x2x1
jax: 0.10.0
libtpu: 0.0.40
codegen_flags: <defaults>
</compile_context>

<pallas_src>
import functools

import jax
import jax.numpy as jnp
from jax.experimental import pallas as pl
from jax.experimental.pallas import tpu as pltpu

EPS = 1e-5


def _round_up(a, b):
    return (a + b - 1) // b * b


def conv_stats_kernel(w_ref, x_ref, conv_ref, sum_ref, sq_ref):
    """One M-tile: conv = W(Op,Kp) @ X(Kp,TM); emit conv + per-channel partial stats."""
    conv = jnp.dot(w_ref[...], x_ref[...], preferred_element_type=jnp.float32)
    conv_ref[...] = conv
    psum = jnp.sum(conv, axis=1, keepdims=True)          # (Op, 1)
    psq = jnp.sum(conv * conv, axis=1, keepdims=True)    # (Op, 1)
    sum_ref[...] = jnp.broadcast_to(psum, sum_ref.shape)
    sq_ref[...] = jnp.broadcast_to(psq, sq_ref.shape)


def bn_apply_kernel(conv_ref, scale_ref, shift_ref, o_ref):
    """One M-tile: y = conv * scale + shift  (scale/shift are per-channel (Op,1))."""
    o_ref[...] = (conv_ref[...] * scale_ref[...] + shift_ref[...]).astype(o_ref.dtype)


def _im2col_T(x, kh, kw, stride, padding, dilation):
    """Return X_colT of shape (C*KH*KW, N*OH*OW); row order matches weight.reshape(O,-1)."""
    N, C, H, W = x.shape
    xp = jnp.pad(x, ((0, 0), (0, 0), (padding, padding), (padding, padding)))
    OH = (H + 2 * padding - dilation * (kh - 1) - 1) // stride + 1
    OW = (W + 2 * padding - dilation * (kw - 1) - 1) // stride + 1
    patches = []
    for i in range(kh):
        for j in range(kw):
            hi, wj = i * dilation, j * dilation
            patches.append(
                xp[:, :,
                   hi:hi + stride * (OH - 1) + 1:stride,
                   wj:wj + stride * (OW - 1) + 1:stride])
    col = jnp.stack(patches, axis=0)        # (KH*KW, N, C, OH, OW)
    col = col.transpose(2, 0, 1, 3, 4)      # (C, KH*KW, N, OH, OW)
    return col.reshape(C * kh * kw, N * OH * OW), OH, OW


def basic_conv2d(x, weight, gamma, beta, *, stride=1, padding=0, dilation=1,
                 block_m=512, compute_dtype=jnp.bfloat16):
    """x: (N,C,H,W); weight: (O,C,KH,KW); gamma/beta: (O,). Returns (N,O,OH,OW)."""
    N, C, H, W = x.shape
    O, _, KH, KW = weight.shape

    xcol_t, OH, OW = _im2col_T(x, KH, KW, stride, padding, dilation)   # (K, M)
    K, M = xcol_t.shape

    Kp = _round_up(K, 128)                                    # MXU-friendly contraction
    Op = _round_up(O, 8)                                      # sublane-aligned channels
    TM = min(_round_up(block_m, 128), _round_up(M, 128))      # lane tile, multiple of 128
    Mp = _round_up(M, TM)
    n_tiles = Mp // TM

    cbytes = jnp.dtype(compute_dtype).itemsize
    obytes = jnp.dtype(x.dtype).itemsize

    # Zero-padded bf16 matmul operands (padding contributes exactly 0 to conv & stats).
    x_t = jnp.pad(xcol_t, ((0, Kp - K), (0, Mp - M))).astype(compute_dtype)       # (Kp, Mp)
    w_t = jnp.pad(weight.reshape(O, K),
                  ((0, Op - O), (0, Kp - K))).astype(compute_dtype)               # (Op, Kp)

    cparams = pltpu.CompilerParams(
        dimension_semantics=("parallel",),
        vmem_limit_bytes=32 * 1024 * 1024)

    # ---- Pass 1: tiled matmul + per-tile per-channel partial sum / sumsq ----
    conv_out, part_sum, part_sq = pl.pallas_call(
        conv_stats_kernel,
        out_shape=(
            jax.ShapeDtypeStruct((Op, Mp), jnp.float32),
            jax.ShapeDtypeStruct((n_tiles, Op, 128), jnp.float32),
            jax.ShapeDtypeStruct((n_tiles, Op, 128), jnp.float32),
        ),
        grid=(n_tiles,),
        in_specs=[
            pl.BlockSpec((Op, Kp), lambda i: (0, 0)),
            pl.BlockSpec((Kp, TM), lambda i: (0, i)),
        ],
        out_specs=(
            pl.BlockSpec((Op, TM), lambda i: (0, i)),
            pl.BlockSpec((1, Op, 128), lambda i: (i, 0, 0)),
            pl.BlockSpec((1, Op, 128), lambda i: (i, 0, 0)),
        ),
        compiler_params=cparams,
        cost_estimate=pl.CostEstimate(
            flops=2 * Op * Kp * Mp,
            transcendentals=0,
            bytes_accessed=(Op * Kp * cbytes + Kp * Mp * cbytes
                            + Op * Mp * 4 + 2 * n_tiles * Op * 128 * 4)),
    )(w_t, x_t)

    # ---- Tiny cross-tile reduction + BN scale/shift (all f32, global real M) ----
    ch_sum = jnp.sum(part_sum[:, :, 0], axis=0)            # (Op,)
    ch_sq = jnp.sum(part_sq[:, :, 0], axis=0)              # (Op,)
    mean = ch_sum / M                                      # real M, not padded Mp
    var = ch_sq / M - mean * mean                          # biased var (BN training mode)
    inv_std = jax.lax.rsqrt(var + EPS)
    gamma_p = jnp.pad(gamma.astype(jnp.float32), (0, Op - O))
    beta_p = jnp.pad(beta.astype(jnp.float32), (0, Op - O))
    scale = (gamma_p * inv_std).reshape(Op, 1)
    shift = (beta_p - mean * gamma_p * inv_std).reshape(Op, 1)

    # ---- Pass 2: lane-dense normalize (one mul+add per element) ----
    y = pl.pallas_call(
        bn_apply_kernel,
        out_shape=jax.ShapeDtypeStruct((Op, Mp), x.dtype),
        grid=(n_tiles,),
        in_specs=[
            pl.BlockSpec((Op, TM), lambda i: (0, i)),
            pl.BlockSpec((Op, 1), lambda i: (0, 0)),
            pl.BlockSpec((Op, 1), lambda i: (0, 0)),
        ],
        out_specs=pl.BlockSpec((Op, TM), lambda i: (0, i)),
        compiler_params=cparams,
        cost_estimate=pl.CostEstimate(
            flops=2 * Op * Mp,
            transcendentals=0,
            bytes_accessed=Op * Mp * 4 + Op * Mp * obytes),
    )(conv_out, scale, shift)

    # (O, M) -> (N, O, OH, OW): only the two small leading axes swap; the contiguous
    # OH*OW minor block is untouched (much cheaper than a full NHWC->NCHW transpose).
    return y[:O, :M].reshape(O, N, OH, OW).transpose(1, 0, 2, 3)


if __name__ == "__main__":
    key = jax.random.PRNGKey(0)
    kx, kw, kg, kb = jax.random.split(key, 4)

    # BasicConv2d(in_planes=4, out_planes=8, kernel_size=3, stride=1, padding=1)
    N, C, O, H, W, KS, PAD = 2, 4, 8, 16, 16, 3, 1
    x = jax.random.normal(kx, (N, C, H, W), jnp.float32)
    weight = jax.random.normal(kw, (O, C, KS, KS), jnp.float32) * 0.1
    gamma = 1.0 + 0.1 * jax.random.normal(kg, (O,), jnp.float32)
    beta = 0.1 * jax.random.normal(kb, (O,), jnp.float32)

    # block_m=128 -> 4 M-tiles at this toy size, exercising the multi-tile pipeline
    # and cross-tile statistics path (default 512 for realistic sizes).
    fwd = jax.jit(functools.partial(basic_conv2d, stride=1, padding=PAD,
                                    dilation=1, block_m=128))
    y = fwd(x, weight, gamma, beta)
    jax.block_until_ready(y)

    # Pure-JAX reference: same bf16-input / f32-accum conv + training-mode BN.
    conv_ref = jax.lax.conv_general_dilated(
        x.astype(jnp.bfloat16), weight.astype(jnp.bfloat16),
        window_strides=(1, 1), padding=((PAD, PAD), (PAD, PAD)),
        rhs_dilation=(1, 1), dimension_numbers=("NCHW", "OIHW", "NCHW"),
        preferred_element_type=jnp.float32)
    mean = conv_ref.mean(axis=(0, 2, 3), keepdims=True)
    var = conv_ref.var(axis=(0, 2, 3), keepdims=True)
    ref = (conv_ref - mean) / jnp.sqrt(var + EPS) * gamma.reshape(1, O, 1, 1) \
          + beta.reshape(1, O, 1, 1)

    assert y.shape == (N, O, H, W), y.shape
    err = float(jnp.max(jnp.abs(y - ref)))
    assert jnp.allclose(y, ref, atol=2e-3, rtol=2e-3), err
    print("KERNEL_OK")
</pallas_src>

<mosaic_0001>
module attributes {stable_mosaic.version = 11 : i64} {
  func.func @conv_stats_kernel(%arg0: i32, %arg1: memref<8x128xbf16, #tpu.memory_space<vmem>>, %arg2: memref<128x128xbf16, #tpu.memory_space<vmem>>, %arg3: memref<8x128xf32, #tpu.memory_space<vmem>>, %arg4: memref<1x8x128xf32, #tpu.memory_space<vmem>>, %arg5: memref<1x8x128xf32, #tpu.memory_space<vmem>>) attributes {dimension_semantics = [#tpu.dimension_semantics<parallel>], iteration_bounds = array<i64: 4>, scalar_prefetch = 0 : i64, scratch_operands = 0 : i64, tpu.core_type = #tpu.core_type<tc>, window_params = [{pipeline_mode = #tpu.pipeline_mode<synchronous>, transform_indices = @transform_0, window_bounds = array<i64: 8, 128>}, {transform_indices = @transform_1, window_bounds = array<i64: 128, 128>}, {transform_indices = @transform_2, window_bounds = array<i64: 8, 128>}, {transform_indices = @transform_3, window_bounds = array<i64: 1, 8, 128>}, {transform_indices = @transform_4, window_bounds = array<i64: 1, 8, 128>}]} {
    %c0 = arith.constant 0 : index
    %c0_0 = arith.constant 0 : index
    %0 = vector.load %arg1[%c0, %c0_0] : memref<8x128xbf16, #tpu.memory_space<vmem>>, vector<8x128xbf16>
    %c0_1 = arith.constant 0 : index
    %c0_2 = arith.constant 0 : index
    %1 = vector.load %arg2[%c0_1, %c0_2] : memref<128x128xbf16, #tpu.memory_space<vmem>>, vector<128x128xbf16>
    %cst = arith.constant dense<0.000000e+00> : vector<8x128xf32>
    %2 = tpu.matmul %0, %1, %cst {dimension_numbers = #tpu.dot_dimension_numbers<[1], [0], [0], [1], [0, 0, 1, 1], [], []>} : vector<8x128xbf16>, vector<128x128xbf16>, vector<8x128xf32> -> vector<8x128xf32>
    %c0_3 = arith.constant 0 : index
    %c0_4 = arith.constant 0 : index
    %3 = vector.load %arg3[%c0_3, %c0_4] : memref<8x128xf32, #tpu.memory_space<vmem>>, vector<8x128xf32>
    tpu.vector_store %arg3[%c0_3, %c0_4], %2 {strides = array<i32>} : memref<8x128xf32, #tpu.memory_space<vmem>>, vector<8x128xf32>,
    %cst_5 = arith.constant dense<0.000000e+00> : vector<8xf32>
    %4 = vector.multi_reduction <add>, %2, %cst_5 [1] : vector<8x128xf32> to vector<8xf32>
    %5 = vector.shape_cast %4 : vector<8xf32> to vector<8x1xf32>
    %6 = arith.mulf %2, %2 : vector<8x128xf32>
    %cst_6 = arith.constant dense<0.000000e+00> : vector<8xf32>
    %7 = vector.multi_reduction <add>, %6, %cst_6 [1] : vector<8x128xf32> to vector<8xf32>
    %8 = vector.shape_cast %7 : vector<8xf32> to vector<8x1xf32>
    %9 = vector.shape_cast %5 : vector<8x1xf32> to vector<1x8x1xf32>
    %10 = vector.broadcast %9 : vector<1x8x1xf32> to vector<1x8x128xf32>
    %c0_7 = arith.constant 0 : index
    %c0_8 = arith.constant 0 : index
    %c0_9 = arith.constant 0 : index
    %11 = vector.load %arg4[%c0_7, %c0_8, %c0_9] : memref<1x8x128xf32, #tpu.memory_space<vmem>>, vector<1x8x128xf32>
    tpu.vector_store %arg4[%c0_7, %c0_8, %c0_9], %10 {strides = array<i32>} : memref<1x8x128xf32, #tpu.memory_space<vmem>>, vector<1x8x128xf32>,
    %12 = vector.shape_cast %8 : vector<8x1xf32> to vector<1x8x1xf32>
    %13 = vector.broadcast %12 : vector<1x8x1xf32> to vector<1x8x128xf32>
    %c0_10 = arith.constant 0 : index
    %c0_11 = arith.constant 0 : index
    %c0_12 = arith.constant 0 : index
    %14 = vector.load %arg5[%c0_10, %c0_11, %c0_12] : memref<1x8x128xf32, #tpu.memory_space<vmem>>, vector<1x8x128xf32>
    tpu.vector_store %arg5[%c0_10, %c0_11, %c0_12], %13 {strides = array<i32>} : memref<1x8x128xf32, #tpu.memory_space<vmem>>, vector<1x8x128xf32>,
    return
  }
  func.func @transform_0(%arg0: i32) -> (i32, i32) {
    %c0_i32 = arith.constant 0 : i32
    %c0_i32_0 = arith.constant 0 : i32
    %c0_i32_1 = arith.constant 0 : i32
    return %c0_i32, %c0_i32_0 : i32, i32
  }
  func.func @transform_1(%arg0: i32) -> (i32, i32) {
    %c0_i32 = arith.constant 0 : i32
    %c0_i32_0 = arith.constant 0 : i32
    return %c0_i32, %arg0 : i32, i32
  }
  func.func @transform_2(%arg0: i32) -> (i32, i32) {
    %c0_i32 = arith.constant 0 : i32
    %c0_i32_0 = arith.constant 0 : i32
    return %c0_i32, %arg0 : i32, i32
  }
  func.func @transform_3(%arg0: i32) -> (i32, i32, i32) {
    %c0_i32 = arith.constant 0 : i32
    %c0_i32_0 = arith.constant 0 : i32
    %c0_i32_1 = arith.constant 0 : i32
    return %arg0, %c0_i32, %c0_i32_0 : i32, i32, i32
  }
  func.func @transform_4(%arg0: i32) -> (i32, i32, i32) {
    %c0_i32 = arith.constant 0 : i32
    %c0_i32_0 = arith.constant 0 : i32
    %c0_i32_1 = arith.constant 0 : i32
    return %arg0, %c0_i32, %c0_i32_0 : i32, i32, i32
  }
}

module attributes {stable_mosaic.version = 11 : i64} {
  func.func @bn_apply_kernel(%arg0: i32, %arg1: memref<8x128xf32, #tpu.memory_space<vmem>>, %arg2: memref<8x1xf32, #tpu.memory_space<vmem>>, %arg3: memref<8x1xf32, #tpu.memory_space<vmem>>, %arg4: memref<8x128xf32, #tpu.memory_space<vmem>>) attributes {dimension_semantics = [#tpu.dimension_semantics<parallel>], iteration_bounds = array<i64: 4>, scalar_prefetch = 0 : i64, scratch_operands = 0 : i64, tpu.core_type = #tpu.core_type<tc>, window_params = [{transform_indices = @transform_0, window_bounds = array<i64: 8, 128>}, {pipeline_mode = #tpu.pipeline_mode<synchronous>, transform_indices = @transform_1, window_bounds = array<i64: 8, 1>}, {pipeline_mode = #tpu.pipeline_mode<synchronous>, transform_indices = @transform_2, window_bounds = array<i64: 8, 1>}, {transform_indices = @transform_3, window_bounds = array<i64: 8, 128>}]} {
    %c0 = arith.constant 0 : index
    %c0_0 = arith.constant 0 : index
    %0 = vector.load %arg1[%c0, %c0_0] : memref<8x128xf32, #tpu.memory_space<vmem>>, vector<8x128xf32>
    %c0_1 = arith.constant 0 : index
    %c0_2 = arith.constant 0 : index
    %1 = vector.load %arg2[%c0_1, %c0_2] : memref<8x1xf32, #tpu.memory_space<vmem>>, vector<8x1xf32>
    %2 = vector.broadcast %1 : vector<8x1xf32> to vector<8x128xf32>
    %3 = arith.mulf %0, %2 : vector<8x128xf32>
    %c0_3 = arith.constant 0 : index
    %c0_4 = arith.constant 0 : index
    %4 = vector.load %arg3[%c0_3, %c0_4] : memref<8x1xf32, #tpu.memory_space<vmem>>, vector<8x1xf32>
    %5 = vector.broadcast %4 : vector<8x1xf32> to vector<8x128xf32>
    %6 = arith.addf %3, %5 : vector<8x128xf32>
    %c0_5 = arith.constant 0 : index
    %c0_6 = arith.constant 0 : index
    %7 = vector.load %arg4[%c0_5, %c0_6] : memref<8x128xf32, #tpu.memory_space<vmem>>, vector<8x128xf32>
    tpu.vector_store %arg4[%c0_5, %c0_6], %6 {strides = array<i32>} : memref<8x128xf32, #tpu.memory_space<vmem>>, vector<8x128xf32>,
    return
  }
  func.func @transform_0(%arg0: i32) -> (i32, i32) {
    %c0_i32 = arith.constant 0 : i32
    %c0_i32_0 = arith.constant 0 : i32
    return %c0_i32, %arg0 : i32, i32
  }
  func.func @transform_1(%arg0: i32) -> (i32, i32) {
    %c0_i32 = arith.constant 0 : i32
    %c0_i32_0 = arith.constant 0 : i32
    %c0_i32_1 = arith.constant 0 : i32
    return %c0_i32, %c0_i32_0 : i32, i32
  }
  func.func @transform_2(%arg0: i32) -> (i32, i32) {
    %c0_i32 = arith.constant 0 : i32
    %c0_i32_0 = arith.constant 0 : i32
    %c0_i32_1 = arith.constant 0 : i32
    return %c0_i32, %c0_i32_0 : i32, i32
  }
  func.func @transform_3(%arg0: i32) -> (i32, i32) {
    %c0_i32 = arith.constant 0 : i32
    %c0_i32_0 = arith.constant 0 : i32
    return %c0_i32, %arg0 : i32, i32
  }
}

</mosaic_0001>

<llo_original>
// kernel: basic_conv2d.3
$region0: #{basic_conv2d.3}
  #allocation0 [shape = 'u32[]', space=smem, size = 0x4, offset = 0x4, fixed_abs, tag = 'smem constant byte address 0x4 - core index']
  #allocation1 [shape = 'u32[144,128]{1,0:T(1,128)}', space=vmem, size = 0x12000, scoped, tag = 'internal scratch']
  %s0 = inlined_call_operand.vmem [shape: f32[8,512], index: 0, kind: input, shape index: {}]
  %s1 = inlined_call_operand.vmem [shape: f32[8,1], index: 1, kind: input, shape index: {}]
  %s2 = inlined_call_operand.vmem [shape: f32[8,1], index: 2, kind: input, shape index: {}]
  %s3 = inlined_call_operand.vmem [shape: f32[8,512], index: 3, kind: output, shape index: {}]
  %s4 = sld [smem:[#allocation0]]
  $region45: #{basic_conv2d.3} parent=0
    _
  %s6 = ssub.s32 1, %s4
  %s7 = scalar_select 0, %s6, %s4
  loop: start=0, step=1, limit=6
  $region2: #{basic_conv2d.3} parent=0 // loop_pre_header
    _
  $region3: #{basic_conv2d.3} parent=0 // loop_header
    %s9 = sphi 0, %s13
    %p10 = scmp.ge.s32.totalorder %s9, 6
    %s19 = sphi 0, %s21
    %s22 = sphi 0, %s19
    %s23 = sphi 0, %s22
    %s39 = sphi 0, %s23
    %s43 = sphi 0, %s43
    %s45 = sphi 0, %s43
    %s46 = sphi 0, %s45
    %s60 = sphi 0, %s46
    %s64 = sphi 0, %s64
    %s66 = sphi 0, %s64
    %s67 = sphi 0, %s66
    %s81 = sphi 0, %s67
    %s87 = sphi 0, %s89
    %s90 = sphi 0, %s87
    %s91 = sphi 0, %s90
    %s107 = sphi 0, %s91
  $region4: #{basic_conv2d.3} parent=0 // loop_header_branch
    %12 = sbr.rel (%p10) target = $region8
  $region5: #{basic_conv2d.3} parent=0 // loop_body
    %s14 = ssub.s32 %s9, 1
    %s15 = ssub.s32 %s9, 2
    %s16 = sadd.s32 %s9, 1
    %s17 = ssub.s32 %s9, %s16
    %p18 = scmp.eq.s32.totalorder %s17, 0
    %s20 = sadd.s32 %s19, 1
    %s21 = scalar_select %p18, %s19, %s20
    %p24 = pneg %p18
    %p25 = scmp.eq.s32.totalorder %s9, 3
    %p26 = por %p24, %p25
    %p27 = scmp.ne.s32.totalorder %s19, %s22
    %p28 = scmp.eq.s32.totalorder %s9, 0
    %p29 = por %p27, %p28
    %p30 = scmp.ne.s32.totalorder %s19, %s22
    %p31 = scmp.eq.s32.totalorder %s14, 3
    %p32 = por %p30, %p31
    %p33 = scmp.ne.s32.totalorder %s22, %s23
    %p34 = scmp.eq.s32.totalorder %s14, 0
    %p35 = por %p33, %p34
    %p36 = scmp.ne.s32.totalorder %s22, %s23
    %p37 = scmp.eq.s32.totalorder %s15, 3
    %p38 = por %p36, %p37
    %p40 = scmp.ne.s32.totalorder %s23, %s39
    %p41 = scmp.eq.s32.totalorder %s15, 0
    %p42 = por %p40, %p41
    %s44 = sadd.s32 %s43, 1
    %p47 = scmp.eq.s32.totalorder %s9, 3
    %p48 = scmp.ne.s32.totalorder %s43, %s45
    %p49 = scmp.eq.s32.totalorder %s9, 0
    %p50 = por %p48, %p49
    %p51 = scmp.ne.s32.totalorder %s43, %s45
    %p52 = scmp.eq.s32.totalorder %s14, 3
    %p53 = por %p51, %p52
    %p54 = scmp.ne.s32.totalorder %s45, %s46
    %p55 = scmp.eq.s32.totalorder %s14, 0
    %p56 = por %p54, %p55
    %p57 = scmp.ne.s32.totalorder %s45, %s46
    %p58 = scmp.eq.s32.totalorder %s15, 3
    %p59 = por %p57, %p58
    %p61 = scmp.ne.s32.totalorder %s46, %s60
    %p62 = scmp.eq.s32.totalorder %s15, 0
    %p63 = por %p61, %p62
    %s65 = sadd.s32 %s64, 1
    %p68 = scmp.eq.s32.totalorder %s9, 3
    %p69 = scmp.ne.s32.totalorder %s64, %s66
    %p70 = scmp.eq.s32.totalorder %s9, 0
    %p71 = por %p69, %p70
    %p72 = scmp.ne.s32.totalorder %s64, %s66
    %p73 = scmp.eq.s32.totalorder %s14, 3
    %p74 = por %p72, %p73
    %p75 = scmp.ne.s32.totalorder %s66, %s67
    %p76 = scmp.eq.s32.totalorder %s14, 0
    %p77 = por %p75, %p76
    %p78 = scmp.ne.s32.totalorder %s66, %s67
    %p79 = scmp.eq.s32.totalorder %s15, 3
    %p80 = por %p78, %p79
    %p82 = scmp.ne.s32.totalorder %s67, %s81
    %p83 = scmp.eq.s32.totalorder %s15, 0
    %p84 = por %p82, %p83
    %s85 = ssub.s32 %s9, %s16
    %p86 = scmp.eq.s32.totalorder %s85, 0
    %s88 = sadd.s32 %s87, 1
    %s89 = scalar_select %p86, %s87, %s88
    %p92 = pneg %p86
    %p93 = scmp.eq.s32.totalorder %s9, 3
    %p94 = por %p92, %p93
    %p95 = scmp.ne.s32.totalorder %s87, %s90
    %p96 = scmp.eq.s32.totalorder %s9, 0
    %p97 = por %p95, %p96
    %p98 = scmp.ne.s32.totalorder %s87, %s90
    %p99 = scmp.eq.s32.totalorder %s14, 3
    %p100 = por %p98, %p99
    %p101 = scmp.ne.s32.totalorder %s90, %s91
    %p102 = scmp.eq.s32.totalorder %s14, 0
    %p103 = por %p101, %p102
    %p104 = scmp.ne.s32.totalorder %s90, %s91
    %p105 = scmp.eq.s32.totalorder %s15, 3
    %p106 = por %p104, %p105
    %p108 = scmp.ne.s32.totalorder %s91, %s107
    %p109 = scmp.eq.s32.totalorder %s15, 0
    %p110 = por %p108, %p109
    %p111 = scmp.le.s32.totalorder 1, %s9
    %p112 = scmp.lt.s32.totalorder %s9, 5
    %p113 = pnand %p111, %p112
    %p114 = pneg %p113
    // Predicated region
    $region9: #{basic_conv2d.3} parent=5 // pred_check
      _
    $region10: #{basic_conv2d.3} parent=5 // pred_check_branch
      %116 = sbr.rel (%p113) target = $region12
    $region11: #{basic_conv2d.3} parent=5 // pred_region
      %s117 = ssub.s32 %s9, 1
      // Predicated region
      $region13: #{basic_conv2d.3} parent=11 // pred_check
        %p118 = pneg %p56
      $region14: #{basic_conv2d.3} parent=11 // pred_check_branch
        %120 = sbr.rel (%p118) target = $region16
      $region15: #{basic_conv2d.3} parent=11 // pred_region
        _
      $region16: #{basic_conv2d.3} parent=11 // pred_fallthru
        _
      // Predicated region
      $region17: #{basic_conv2d.3} parent=11 // pred_check
        %p121 = pneg %p77
      $region18: #{basic_conv2d.3} parent=11 // pred_check_branch
        %123 = sbr.rel (%p121) target = $region20
      $region19: #{basic_conv2d.3} parent=11 // pred_region
        _
      $region20: #{basic_conv2d.3} parent=11 // pred_fallthru
        _
    $region12: #{basic_conv2d.3} parent=5 // pred_fallthru
      _
    %p124 = scmp.lt.s32.totalorder %s9, 4
    // Predicated region
    $region21: #{basic_conv2d.3} parent=5 // pred_check
      %p125 = pneg %p124
    $region22: #{basic_conv2d.3} parent=5 // pred_check_branch
      %127 = sbr.rel (%p125) target = $region24
    $region23: #{basic_conv2d.3} parent=5 // pred_region
      // Predicated region
      $region25: #{basic_conv2d.3} parent=23 // pred_check
        %p128 = pneg %p29
      $region26: #{basic_conv2d.3} parent=23 // pred_check_branch
        %130 = sbr.rel (%p128) target = $region28
      $region27: #{basic_conv2d.3} parent=23 // pred_region
        %p131 = scmp.lt.s32.totalorder %s9, 3
        %s132 = scalar_select %p131, %s9, 3
        %s133 = smul.addr %s132, 8
        %s134 = scalar_lea.vmem %s0, %s133
      $region28: #{basic_conv2d.3} parent=23 // pred_fallthru
        _
    $region24: #{basic_conv2d.3} parent=5 // pred_fallthru
      _
    %p135 = scmp.le.s32.totalorder 1, %s9
    %p136 = scmp.lt.s32.totalorder %s9, 5
    %p137 = pnand %p135, %p136
    %p138 = pneg %p137
    // Predicated region
    $region29: #{basic_conv2d.3} parent=5 // pred_check
      _
    $region30: #{basic_conv2d.3} parent=5 // pred_check_branch
      %140 = sbr.rel (%p137) target = $region32
    $region31: #{basic_conv2d.3} parent=5 // pred_region
      %s141 = ssub.s32 %s9, 1
      %p142 = scmp.lt.s32.totalorder %s14, 3
      %s143 = scalar_select %p142, %s14, 3
      %s144 = smul.addr %s143, 8
      %s145 = scalar_lea.vmem %s0, %s144
      %p146 = pneg %p35
      %p147 = pneg %p32
      %p148 = pneg %p56
      %p149 = pneg %p53
      %p150 = pneg %p77
      %p151 = pneg %p74
      %p152 = pneg %p103
      %p153 = pneg %p100
      %p154 = scmp.lt.s32.totalorder %s14, 3
      %s155 = scalar_select %p154, %s14, 3
      %s156 = smul.addr %s155, 8
      %s157 = scalar_lea.vmem %s3, %s156
      %p158 = scmp.lt.s32.totalorder %s14, 3
      %s159 = scalar_select %p158, %s14, 3
      %s160 = smul.addr %s159, 8
      %s161 = scalar_lea.vmem %s0, %s160
      %p162 = scmp.lt.s32.totalorder %s14, 3
      %s163 = scalar_select %p162, %s14, 3
      %s164 = smul.addr %s163, 8
      %s165 = scalar_lea.vmem %s3, %s164
      %v166 = vld [vmem:[%s161] sm:$0xff]
      %v167 = vld [vmem:[%s1] sm:$0xff]
      %169 = vset.pattern.permute.xlu0 0
      %170 = vperm.xlu0 %169, %v167
      %v171 = vpop.permute.xlu0 %170
      %v173 = vmul.f32 %v166, %v171
      %v174 = vld [vmem:[%s2] sm:$0xff]
      %176 = vset.pattern.permute.xlu0 0
      %177 = vperm.xlu0 %176, %v174
      %v178 = vpop.permute.xlu0 %177
      %v180 = vadd.f32 %v173, %v178
      %181 = vst [vmem:[%s165] sm:$0xff] %v180
      %p182 = scmp.lt.s32.totalorder %s14, 3
      %s183 = scalar_select %p182, %s14, 3
      %s184 = smul.addr %s183, 8
      %s185 = scalar_lea.vmem %s3, %s184
      // Predicated region
      $region33: #{basic_conv2d.3} parent=31 // pred_check
        %p186 = pneg %p100
      $region34: #{basic_conv2d.3} parent=31 // pred_check_branch
        %188 = sbr.rel (%p186) target = $region36
      $region35: #{basic_conv2d.3} parent=31 // pred_region
        _
      $region36: #{basic_conv2d.3} parent=31 // pred_fallthru
        _
    $region32: #{basic_conv2d.3} parent=5 // pred_fallthru
      _
    %p189 = scmp.le.s32.totalorder 2, %s9
    // Predicated region
    $region37: #{basic_conv2d.3} parent=5 // pred_check
      %p190 = pneg %p189
    $region38: #{basic_conv2d.3} parent=5 // pred_check_branch
      %192 = sbr.rel (%p190) target = $region40
    $region39: #{basic_conv2d.3} parent=5 // pred_region
      %s193 = ssub.s32 %s9, 2
      // Predicated region
      $region41: #{basic_conv2d.3} parent=39 // pred_check
        %p194 = pneg %p106
      $region42: #{basic_conv2d.3} parent=39 // pred_check_branch
        %196 = sbr.rel (%p194) target = $region44
      $region43: #{basic_conv2d.3} parent=39 // pred_region
        %p197 = scmp.lt.s32.totalorder %s15, 3
        %s198 = scalar_select %p197, %s15, 3
        %s199 = smul.addr %s198, 8
        %s200 = scalar_lea.vmem %s3, %s199
      $region44: #{basic_conv2d.3} parent=39 // pred_fallthru
        _
    $region40: #{basic_conv2d.3} parent=5 // pred_fallthru
      _
  $region6: #{basic_conv2d.3} parent=0 // loop_footer
    %s13 = sadd.s32 1, %s9
  $region7: #{basic_conv2d.3} parent=0 // loop_footer_branch
    %8 = sbr.rel target = $region3
  $region8: #{basic_conv2d.3} parent=0 // loop_exit
    _

// kernel: basic_conv2d.2
$region0: #{basic_conv2d.2}
  #allocation0 [shape = 'u32[]', space=smem, size = 0x4, offset = 0x4, fixed_abs, tag = 'smem constant byte address 0x4 - core index']
  #allocation1 [shape = 'u32[144,128]{1,0:T(1,128)}', space=vmem, size = 0x12000, scoped, tag = 'internal scratch']
  %s0 = inlined_call_operand.vmem [shape: bf16[8,128], index: 0, kind: input, shape index: {}]
  %s1 = inlined_call_operand.vmem [shape: bf16[128,512], index: 1, kind: input, shape index: {}]
  %s2 = inlined_call_operand.vmem [shape: f32[8,512], index: 2, kind: output, shape index: {0}]
  %s3 = inlined_call_operand.vmem [shape: f32[4,8,128], index: 3, kind: output, shape index: {1}]
  %s4 = inlined_call_operand.vmem [shape: f32[4,8,128], index: 4, kind: output, shape index: {2}]
  %5 = xla_tuple %s2, %s3, %s4
  %s6 = sld [smem:[#allocation0]]
  $region98: #{basic_conv2d.2} parent=0
    _
  %s8 = ssub.s32 1, %s6
  %s9 = scalar_select 0, %s8, %s6
  $region1: #{basic_conv2d.2} parent=0
    #allocation2 [shape = 'u8[65536]{0}', space=vmem, size = 0x10000, scoped, tag = 'input window, operand 1']
    loop: start=0, step=1, limit=6
    $region2: #{basic_conv2d.2} parent=1 // loop_pre_header
      _
    $region3: #{basic_conv2d.2} parent=1 // loop_header
      %s11 = sphi 0, %s15
      %p12 = scmp.ge.s32.totalorder %s11, 6
      %s19 = sphi 0, %s19
      %s21 = sphi 0, %s19
      %s22 = sphi 0, %s21
      %s36 = sphi 0, %s22
      %s42 = sphi 0, %s44
      %s45 = sphi 0, %s42
      %s46 = sphi 0, %s45
      %s62 = sphi 0, %s46
      %s68 = sphi 0, %s70
      %s71 = sphi 0, %s68
      %s72 = sphi 0, %s71
      %s88 = sphi 0, %s72
      %s94 = sphi 0, %s96
      %s97 = sphi 0, %s94
      %s98 = sphi 0, %s97
      %s114 = sphi 0, %s98
      %s120 = sphi 0, %s122
      %s123 = sphi 0, %s120
      %s124 = sphi 0, %s123
      %s140 = sphi 0, %s124
    $region4: #{basic_conv2d.2} parent=1 // loop_header_branch
      %14 = sbr.rel (%p12) target = $region8
    $region5: #{basic_conv2d.2} parent=1 // loop_body
      %s16 = ssub.s32 %s11, 1
      %s17 = ssub.s32 %s11, 2
      %s18 = sadd.s32 %s11, 1
      %s20 = sadd.s32 %s19, 1
      %p23 = scmp.eq.s32.totalorder %s11, 3
      %p24 = scmp.ne.s32.totalorder %s19, %s21
      %p25 = scmp.eq.s32.totalorder %s11, 0
      %p26 = por %p24, %p25
      %p27 = scmp.ne.s32.totalorder %s19, %s21
      %p28 = scmp.eq.s32.totalorder %s16, 3
      %p29 = por %p27, %p28
      %p30 = scmp.ne.s32.totalorder %s21, %s22
      %p31 = scmp.eq.s32.totalorder %s16, 0
      %p32 = por %p30, %p31
      %p33 = scmp.ne.s32.totalorder %s21, %s22
      %p34 = scmp.eq.s32.totalorder %s17, 3
      %p35 = por %p33, %p34
      %p37 = scmp.ne.s32.totalorder %s22, %s36
      %p38 = scmp.eq.s32.totalorder %s17, 0
      %p39 = por %p37, %p38
      %s40 = ssub.s32 %s11, %s18
      %p41 = scmp.eq.s32.totalorder %s40, 0
      %s43 = sadd.s32 %s42, 1
      %s44 = scalar_select %p41, %s42, %s43
      %p47 = pneg %p41
      %p48 = scmp.eq.s32.totalorder %s11, 3
      %p49 = por %p47, %p48
      %p50 = scmp.ne.s32.totalorder %s42, %s45
      %p51 = scmp.eq.s32.totalorder %s11, 0
      %p52 = por %p50, %p51
      %p53 = scmp.ne.s32.totalorder %s42, %s45
      %p54 = scmp.eq.s32.totalorder %s16, 3
      %p55 = por %p53, %p54
      %p56 = scmp.ne.s32.totalorder %s45, %s46
      %p57 = scmp.eq.s32.totalorder %s16, 0
      %p58 = por %p56, %p57
      %p59 = scmp.ne.s32.totalorder %s45, %s46
      %p60 = scmp.eq.s32.totalorder %s17, 3
      %p61 = por %p59, %p60
      %p63 = scmp.ne.s32.totalorder %s46, %s62
      %p64 = scmp.eq.s32.totalorder %s17, 0
      %p65 = por %p63, %p64
      %s66 = ssub.s32 %s11, %s18
      %p67 = scmp.eq.s32.totalorder %s66, 0
      %s69 = sadd.s32 %s68, 1
      %s70 = scalar_select %p67, %s68, %s69
      %p73 = pneg %p67
      %p74 = scmp.eq.s32.totalorder %s11, 3
      %p75 = por %p73, %p74
      %p76 = scmp.ne.s32.totalorder %s68, %s71
      %p77 = scmp.eq.s32.totalorder %s11, 0
      %p78 = por %p76, %p77
      %p79 = scmp.ne.s32.totalorder %s68, %s71
      %p80 = scmp.eq.s32.totalorder %s16, 3
      %p81 = por %p79, %p80
      %p82 = scmp.ne.s32.totalorder %s71, %s72
      %p83 = scmp.eq.s32.totalorder %s16, 0
      %p84 = por %p82, %p83
      %p85 = scmp.ne.s32.totalorder %s71, %s72
      %p86 = scmp.eq.s32.totalorder %s17, 3
      %p87 = por %p85, %p86
      %p89 = scmp.ne.s32.totalorder %s72, %s88
      %p90 = scmp.eq.s32.totalorder %s17, 0
      %p91 = por %p89, %p90
      %s92 = ssub.s32 %s11, %s18
      %p93 = scmp.eq.s32.totalorder %s92, 0
      %s95 = sadd.s32 %s94, 1
      %s96 = scalar_select %p93, %s94, %s95
      %p99 = pneg %p93
      %p100 = scmp.eq.s32.totalorder %s11, 3
      %p101 = por %p99, %p100
      %p102 = scmp.ne.s32.totalorder %s94, %s97
      %p103 = scmp.eq.s32.totalorder %s11, 0
      %p104 = por %p102, %p103
      %p105 = scmp.ne.s32.totalorder %s94, %s97
      %p106 = scmp.eq.s32.totalorder %s16, 3
      %p107 = por %p105, %p106
      %p108 = scmp.ne.s32.totalorder %s97, %s98
      %p109 = scmp.eq.s32.totalorder %s16, 0
      %p110 = por %p108, %p109
      %p111 = scmp.ne.s32.totalorder %s97, %s98
      %p112 = scmp.eq.s32.totalorder %s17, 3
      %p113 = por %p111, %p112
      %p115 = scmp.ne.s32.totalorder %s98, %s114
      %p116 = scmp.eq.s32.totalorder %s17, 0
      %p117 = por %p115, %p116
      %s118 = ssub.s32 %s11, %s18
      %p119 = scmp.eq.s32.totalorder %s118, 0
      %s121 = sadd.s32 %s120, 1
      %s122 = scalar_select %p119, %s120, %s121
      %p125 = pneg %p119
      %p126 = scmp.eq.s32.totalorder %s11, 3
      %p127 = por %p125, %p126
      %p128 = scmp.ne.s32.totalorder %s120, %s123
      %p129 = scmp.eq.s32.totalorder %s11, 0
      %p130 = por %p128, %p129
      %p131 = scmp.ne.s32.totalorder %s120, %s123
      %p132 = scmp.eq.s32.totalorder %s16, 3
      %p133 = por %p131, %p132
      %p134 = scmp.ne.s32.totalorder %s123, %s124
      %p135 = scmp.eq.s32.totalorder %s16, 0
      %p136 = por %p134, %p135
      %p137 = scmp.ne.s32.totalorder %s123, %s124
      %p138 = scmp.eq.s32.totalorder %s17, 3
      %p139 = por %p137, %p138
      %p141 = scmp.ne.s32.totalorder %s124, %s140
      %p142 = scmp.eq.s32.totalorder %s17, 0
      %p143 = por %p141, %p142
      %p144 = scmp.le.s32.totalorder 1, %s11
      %p145 = scmp.lt.s32.totalorder %s11, 5
      %p146 = pnand %p144, %p145
      %p147 = pneg %p146
      // Predicated region
      $region9: #{basic_conv2d.2} parent=5 // pred_check
        _
      $region10: #{basic_conv2d.2} parent=5 // pred_check_branch
        %149 = sbr.rel (%p146) target = $region12
      $region11: #{basic_conv2d.2} parent=5 // pred_region
        %s150 = ssub.s32 %s11, 1
        // Predicated region
        $region13: #{basic_conv2d.2} parent=11 // pred_check
          %p151 = pneg %p32
        $region14: #{basic_conv2d.2} parent=11 // pred_check_branch
          %153 = sbr.rel (%p151) target = $region16
        $region15: #{basic_conv2d.2} parent=11 // pred_region
          _
        $region16: #{basic_conv2d.2} parent=11 // pred_fallthru
          _
      $region12: #{basic_conv2d.2} parent=5 // pred_fallthru
        _
      %p154 = scmp.lt.s32.totalorder %s11, 4
      // Predicated region
      $region17: #{basic_conv2d.2} parent=5 // pred_check
        %p155 = pneg %p154
      $region18: #{basic_conv2d.2} parent=5 // pred_check_branch
        %157 = sbr.rel (%p155) target = $region20
      $region19: #{basic_conv2d.2} parent=5 // pred_region
        // Predicated region
        $region21: #{basic_conv2d.2} parent=19 // pred_check
          %p158 = pneg %p52
        $region22: #{basic_conv2d.2} parent=19 // pred_check_branch
          %160 = sbr.rel (%p158) target = $region24
        $region23: #{basic_conv2d.2} parent=19 // pred_region
          %s161 = sand.u32 %s42, 1
          %s162 = sand.u32 %s42, 1
          %s163 = smul.addr %s162, 64
          %s164 = scalar_lea.vmem [#allocation2], %s163
          %s165 = smul.addr %s11, 4
          %s166 = scalar_lea.vmem %s1, %s165
          // Predicated region
          $region25: #{basic_conv2d.2} parent=23 // pred_check
            _
          $region26: #{basic_conv2d.2} parent=23 // pred_check_branch
            %168 = sbr.rel (0) target = $region28
          $region27: #{basic_conv2d.2} parent=23 // pred_region
            // Predicated region
            $region29: #{basic_conv2d.2} parent=27 // pred_check
              _
            $region30: #{basic_conv2d.2} parent=27 // pred_check_branch
              %170 = sbr.rel target = $region32
            $region31: #{basic_conv2d.2} parent=27 // pred_region
              // Predicated region
              $region44: #{basic_conv2d.2} parent=31 // pred_check
                _
              $region45: #{basic_conv2d.2} parent=31 // pred_check_branch
                %216 = sbr.rel (0) target = $region47
              $region46: #{basic_conv2d.2} parent=31 // pred_region
                loop: start=0, step=1, limit=1
                $region48: #{basic_conv2d.2} parent=46 // loop_pre_header
                  _
                $region49: #{basic_conv2d.2} parent=46 // loop_header
                  %s218 = sphi 0, %s222
                  %p219 = scmp.ge.s32.totalorder %s218, 1
                  %s223 = sphi %s166, %s166
                  %s224 = sphi %s164, %s164
                $region50: #{basic_conv2d.2} parent=46 // loop_header_branch
                  %221 = sbr.rel (%p219) target = $region54
                $region51: #{basic_conv2d.2} parent=46 // loop_body
                  _
                $region52: #{basic_conv2d.2} parent=46 // loop_footer
                  %s222 = sadd.s32 1, %s218
                $region53: #{basic_conv2d.2} parent=46 // loop_footer_branch
                  %217 = sbr.rel target = $region49
                $region54: #{basic_conv2d.2} parent=46 // loop_exit
                  _
                %s226 = ssub.s32 16, 1
                loop: start=0, step=1, limit=1
                $region55: #{basic_conv2d.2} parent=46 // loop_pre_header
                  _
                $region56: #{basic_conv2d.2} parent=46 // loop_header
                  %s228 = sphi 0, %s232
                  %p229 = scmp.ge.s32.totalorder %s228, 1
                  %s233 = sphi %s166, %s166
                  %s234 = sphi %s164, %s164
                $region57: #{basic_conv2d.2} parent=46 // loop_header_branch
                  %231 = sbr.rel (%p229) target = $region61
                $region58: #{basic_conv2d.2} parent=46 // loop_body
                  %v235 = vld [vmem:[%s233] sm:%s226]
                  %236 = vst [vmem:[%s234] sm:%s226] %v235
                  %v237 = vld [vmem:[%s233 + $0x10] sm:%s226]
                  %238 = vst [vmem:[%s234 + $0x4] sm:%s226] %v237
                  %v239 = vld [vmem:[%s233 + $0x20] sm:%s226]
                  %240 = vst [vmem:[%s234 + $0x8] sm:%s226] %v239
                  %v241 = vld [vmem:[%s233 + $0x30] sm:%s226]
                  %242 = vst [vmem:[%s234 + $0xc] sm:%s226] %v241
                  %v243 = vld [vmem:[%s233 + $0x40] sm:%s226]
                  %244 = vst [vmem:[%s234 + $0x10] sm:%s226] %v243
                  %v245 = vld [vmem:[%s233 + $0x50] sm:%s226]
                  %246 = vst [vmem:[%s234 + $0x14] sm:%s226] %v245
                  %v247 = vld [vmem:[%s233 + $0x60] sm:%s226]
                  %248 = vst [vmem:[%s234 + $0x18] sm:%s226] %v247
                  %v249 = vld [vmem:[%s233 + $0x70] sm:%s226]
                  %250 = vst [vmem:[%s234 + $0x1c] sm:%s226] %v249
                  %v251 = vld [vmem:[%s233 + $0x80] sm:%s226]
                  %252 = vst [vmem:[%s234 + $0x20] sm:%s226] %v251
                  %v253 = vld [vmem:[%s233 + $0x90] sm:%s226]
                  %254 = vst [vmem:[%s234 + $0x24] sm:%s226] %v253
                  %v255 = vld [vmem:[%s233 + $0xa0] sm:%s226]
                  %256 = vst [vmem:[%s234 + $0x28] sm:%s226] %v255
                  %v257 = vld [vmem:[%s233 + $0xb0] sm:%s226]
                  %258 = vst [vmem:[%s234 + $0x2c] sm:%s226] %v257
                  %v259 = vld [vmem:[%s233 + $0xc0] sm:%s226]
                  %260 = vst [vmem:[%s234 + $0x30] sm:%s226] %v259
                  %v261 = vld [vmem:[%s233 + $0xd0] sm:%s226]
                  %262 = vst [vmem:[%s234 + $0x34] sm:%s226] %v261
                  %v263 = vld [vmem:[%s233 + $0xe0] sm:%s226]
                  %264 = vst [vmem:[%s234 + $0x38] sm:%s226] %v263
                  %v265 = vld [vmem:[%s233 + $0xf0] sm:%s226]
                  %266 = vst [vmem:[%s234 + $0x3c] sm:%s226] %v265
                $region59: #{basic_conv2d.2} parent=46 // loop_footer
                  %s232 = sadd.s32 1, %s228
                $region60: #{basic_conv2d.2} parent=46 // loop_footer_branch
                  %227 = sbr.rel target = $region56
                $region61: #{basic_conv2d.2} parent=46 // loop_exit
                  _
              $region47: #{basic_conv2d.2} parent=31 // pred_fallthru
                _
            $region32: #{basic_conv2d.2} parent=27 // pred_fallthru
              _
            // Predicated region
            $region33: #{basic_conv2d.2} parent=27 // pred_check
              _
            $region34: #{basic_conv2d.2} parent=27 // pred_check_branch
              %172 = sbr.rel (0) target = $region36
            $region35: #{basic_conv2d.2} parent=27 // pred_region
              %s174 = ssub.s32 16, 1
              loop: start=0, step=1, limit=1
              $region37: #{basic_conv2d.2} parent=35 // loop_pre_header
                _
              $region38: #{basic_conv2d.2} parent=35 // loop_header
                %s176 = sphi 0, %s180
                %p177 = scmp.ge.s32.totalorder %s176, 1
                %s181 = sphi %s166, %s166
                %s182 = sphi %s164, %s164
              $region39: #{basic_conv2d.2} parent=35 // loop_header_branch
                %179 = sbr.rel (%p177) target = $region43
              $region40: #{basic_conv2d.2} parent=35 // loop_body
                %v183 = vld [vmem:[%s181] sm:%s174]
                %184 = vst [vmem:[%s182] sm:%s174] %v183
                %v185 = vld [vmem:[%s181 + $0x10] sm:%s174]
                %186 = vst [vmem:[%s182 + $0x4] sm:%s174] %v185
                %v187 = vld [vmem:[%s181 + $0x20] sm:%s174]
                %188 = vst [vmem:[%s182 + $0x8] sm:%s174] %v187
                %v189 = vld [vmem:[%s181 + $0x30] sm:%s174]
                %190 = vst [vmem:[%s182 + $0xc] sm:%s174] %v189
                %v191 = vld [vmem:[%s181 + $0x40] sm:%s174]
                %192 = vst [vmem:[%s182 + $0x10] sm:%s174] %v191
                %v193 = vld [vmem:[%s181 + $0x50] sm:%s174]
                %194 = vst [vmem:[%s182 + $0x14] sm:%s174] %v193
                %v195 = vld [vmem:[%s181 + $0x60] sm:%s174]
                %196 = vst [vmem:[%s182 + $0x18] sm:%s174] %v195
                %v197 = vld [vmem:[%s181 + $0x70] sm:%s174]
                %198 = vst [vmem:[%s182 + $0x1c] sm:%s174] %v197
                %v199 = vld [vmem:[%s181 + $0x80] sm:%s174]
                %200 = vst [vmem:[%s182 + $0x20] sm:%s174] %v199
                %v201 = vld [vmem:[%s181 + $0x90] sm:%s174]
                %202 = vst [vmem:[%s182 + $0x24] sm:%s174] %v201
                %v203 = vld [vmem:[%s181 + $0xa0] sm:%s174]
                %204 = vst [vmem:[%s182 + $0x28] sm:%s174] %v203
                %v205 = vld [vmem:[%s181 + $0xb0] sm:%s174]
                %206 = vst [vmem:[%s182 + $0x2c] sm:%s174] %v205
                %v207 = vld [vmem:[%s181 + $0xc0] sm:%s174]
                %208 = vst [vmem:[%s182 + $0x30] sm:%s174] %v207
                %v209 = vld [vmem:[%s181 + $0xd0] sm:%s174]
                %210 = vst [vmem:[%s182 + $0x34] sm:%s174] %v209
                %v211 = vld [vmem:[%s181 + $0xe0] sm:%s174]
                %212 = vst [vmem:[%s182 + $0x38] sm:%s174] %v211
                %v213 = vld [vmem:[%s181 + $0xf0] sm:%s174]
                %214 = vst [vmem:[%s182 + $0x3c] sm:%s174] %v213
              $region41: #{basic_conv2d.2} parent=35 // loop_footer
                %s180 = sadd.s32 1, %s176
              $region42: #{basic_conv2d.2} parent=35 // loop_footer_branch
                %175 = sbr.rel target = $region38
              $region43: #{basic_conv2d.2} parent=35 // loop_exit
                _
            $region36: #{basic_conv2d.2} parent=27 // pred_fallthru
              _
          $region28: #{basic_conv2d.2} parent=23 // pred_fallthru
            _
          %267 = vnop
        $region24: #{basic_conv2d.2} parent=19 // pred_fallthru
          _
      $region20: #{basic_conv2d.2} parent=5 // pred_fallthru
        _
      %p268 = scmp.le.s32.totalorder 1, %s11
      %p269 = scmp.lt.s32.totalorder %s11, 5
      %p270 = pnand %p268, %p269
      %p271 = pneg %p270
      // Predicated region
      $region62: #{basic_conv2d.2} parent=5 // pred_check
        _
      $region63: #{basic_conv2d.2} parent=5 // pred_check_branch
        %273 = sbr.rel (%p270) target = $region65
      $region64: #{basic_conv2d.2} parent=5 // pred_region
        %s274 = ssub.s32 %s11, 1
        %s275 = sand.u32 %s45, 1
        %s276 = sand.u32 %s45, 1
        %s277 = smul.addr %s276, 64
        %s278 = scalar_lea.vmem [#allocation2], %s277
        // Predicated region
        $region66: #{basic_conv2d.2} parent=64 // pred_check
          %p279 = pneg %p58
        $region67: #{basic_conv2d.2} parent=64 // pred_check_branch
          %281 = sbr.rel (%p279) target = $region69
        $region68: #{basic_conv2d.2} parent=64 // pred_region
          _
        $region69: #{basic_conv2d.2} parent=64 // pred_fallthru
          _
        %p282 = pneg %p32
        %p283 = pneg %p29
        %s284 = sand.u32 %s45, 1
        %s285 = sand.u32 %s45, 1
        %s286 = smul.addr %s285, 64
        %s287 = scalar_lea.vmem [#allocation2], %s286
        %p288 = pneg %p58
        %p289 = pneg %p55
        %p290 = pneg %p84
        %p291 = pneg %p81
        %p292 = scmp.lt.s32.totalorder %s16, 3
        %s293 = scalar_select %p292, %s16, 3
        %s294 = smul.addr %s293, 8
        %s295 = scalar_lea.vmem %s2, %s294
        %p296 = pneg %p110
        %p297 = pneg %p107
        %p298 = scmp.lt.s32.totalorder %s16, 3
        %s299 = scalar_select %p298, %s16, 3
        %s300 = smul.addr %s299, 8
        %s301 = scalar_lea.vmem %s3, %s300
        %p302 = pneg %p136
        %p303 = pneg %p133
        %p304 = scmp.lt.s32.totalorder %s16, 3
        %s305 = scalar_select %p304, %s16, 3
        %s306 = smul.addr %s305, 8
        %s307 = scalar_lea.vmem %s4, %s306
        %p308 = scmp.lt.s32.totalorder %s16, 3
        %s309 = scalar_select %p308, %s16, 3
        %s310 = smul.addr %s309, 8
        %s311 = scalar_lea.vmem %s2, %s310
        %p312 = scmp.lt.s32.totalorder %s16, 3
        %s313 = scalar_select %p312, %s16, 3
        %s314 = smul.addr %s313, 8
        %s315 = scalar_lea.vmem %s3, %s314
        %p316 = scmp.lt.s32.totalorder %s16, 3
        %s317 = scalar_select %p316, %s16, 3
        %s318 = smul.addr %s317, 8
        %s319 = scalar_lea.vmem %s4, %s318
        %v321 = vld [vmem:[%s0] sm:$0xf]
        %v322 = vld [vmem:[%s278] sm:$0xf]
        %v323 = vld [vmem:[%s278 + $0x4] sm:$0xf]
        %v324 = vld [vmem:[%s278 + $0x8] sm:$0xf]
        %v325 = vld [vmem:[%s278 + $0xc] sm:$0xf]
        %v326 = vld [vmem:[%s278 + $0x10] sm:$0xf]
        %v327 = vld [vmem:[%s278 + $0x14] sm:$0xf]
        %v328 = vld [vmem:[%s278 + $0x18] sm:$0xf]
        %v329 = vld [vmem:[%s278 + $0x1c] sm:$0xf]
        %v330 = vld [vmem:[%s278 + $0x20] sm:$0xf]
        %v331 = vld [vmem:[%s278 + $0x24] sm:$0xf]
        %v332 = vld [vmem:[%s278 + $0x28] sm:$0xf]
        %v333 = vld [vmem:[%s278 + $0x2c] sm:$0xf]
        %v334 = vld [vmem:[%s278 + $0x30] sm:$0xf]
        %v335 = vld [vmem:[%s278 + $0x34] sm:$0xf]
        %v336 = vld [vmem:[%s278 + $0x38] sm:$0xf]
        %v337 = vld [vmem:[%s278 + $0x3c] sm:$0xf]
        %v354 = vunpack.c.l.b16 %v322
        %v355 = vunpack.c.l.b16 %v323
        %v356 = vunpack.c.l.b16 %v324
        %v357 = vunpack.c.l.b16 %v325
        %v358 = vunpack.c.l.b16 %v326
        %v359 = vunpack.c.l.b16 %v327
        %v360 = vunpack.c.l.b16 %v328
        %v361 = vunpack.c.l.b16 %v329
        %v362 = vunpack.c.l.b16 %v330
        %v363 = vunpack.c.l.b16 %v331
        %v364 = vunpack.c.l.b16 %v332
        %v365 = vunpack.c.l.b16 %v333
        %v366 = vunpack.c.l.b16 %v334
        %v367 = vunpack.c.l.b16 %v335
        %v368 = vunpack.c.l.b16 %v336
        %v369 = vunpack.c.l.b16 %v337
        %v370 = vpack.c.b16 %v355, %v354
        %v371 = vpack.c.b16 %v357, %v356
        %v372 = vpack.c.b16 %v359, %v358
        %v373 = vpack.c.b16 %v361, %v360
        %v374 = vpack.c.b16 %v363, %v362
        %v375 = vpack.c.b16 %v365, %v364
        %v376 = vpack.c.b16 %v367, %v366
        %v377 = vpack.c.b16 %v369, %v368
        %386 = vmatprep.subr.bf16.mxu0 0
        %387 = vmatpush1.bf16.msra.mxu0 %v377
        %388 = vmatprep.subr.bf16.mxu0 0
        %389 = vmatpush1.bf16.msra.mxu0 %v376
        %390 = vmatprep.subr.bf16.mxu0 0
        %391 = vmatpush1.bf16.msra.mxu0 %v375
        %392 = vmatprep.subr.bf16.mxu0 0
        %393 = vmatpush1.bf16.msra.mxu0 %v374
        %394 = vmatprep.subr.bf16.mxu0 0
        %395 = vmatpush1.bf16.msra.mxu0 %v373
        %396 = vmatprep.subr.bf16.mxu0 0
        %397 = vmatpush1.bf16.msra.mxu0 %v372
        %398 = vmatprep.subr.bf16.mxu0 0
        %399 = vmatpush1.bf16.msra.mxu0 %v371
        %400 = vmatprep.subr.bf16.mxu0 0
        %401 = vmatpush1.bf16.msra.mxu0 %v370
        %402 = vmatprep.subr.bf16.mxu0 0
        %403 = vmatpush2.bf16.msra.mxu0 0
        %404 = vmatprep.subr.bf16.mxu0 0
        %405 = vmatpush2.bf16.msra.mxu0 0
        %406 = vmatprep.subr.bf16.mxu0 0
        %407 = vmatpush2.bf16.msra.mxu0 0
        %408 = vmatprep.subr.bf16.mxu0 0
        %409 = vmatpush2.bf16.msra.mxu0 0
        %410 = vmatprep.subr.bf16.mxu0 0
        %411 = vmatpush2.bf16.msra.mxu0 0
        %412 = vmatprep.subr.bf16.mxu0 0
        %413 = vmatpush2.bf16.msra.mxu0 0
        %414 = vmatprep.subr.bf16.mxu0 0
        %415 = vmatpush2.bf16.msra.mxu0 0
        %416 = vmatprep.subr.bf16.mxu0 0
        %417 = vmatpush2.bf16.msra.mxu0 0
        %418 = vmatprep.mubr.bf16.mxu0 0
        %419 = vmatmul.mubr.bf16.gmra.mxu0 %v321
        %v420 = vpop.f32.mrf.mxu0
        %v421 = vadd.f32 0.0, %v420
        %v422 = vpop.f32.mrf.mxu0
        %v423 = vpop.f32.mrf.mxu0
        %v424 = vpop.f32.mrf.mxu0
        %425 = vdwg.mxu0
        %426 = vst [vmem:[%s311] sm:$0xff] %v421
        %427 = vadd.xlane.f32.xlu0 %v421
        %v428 = vpop.xlane.xlu0 %427
        %v429 = vmul.f32 %v421, %v421
        %430 = vadd.xlane.f32.xlu0 %v429
        %v431 = vpop.xlane.xlu0 %430
        %432 = vst [vmem:[%s315] sm:$0xff] %v428
        %433 = vst [vmem:[%s319] sm:$0xff] %v431
        %p434 = scmp.lt.s32.totalorder %s16, 3
        %s435 = scalar_select %p434, %s16, 3
        %s436 = smul.addr %s435, 8
        %s437 = scalar_lea.vmem %s2, %s436
        %p438 = scmp.lt.s32.totalorder %s16, 3
        %s439 = scalar_select %p438, %s16, 3
        %s440 = smul.addr %s439, 8
        %s441 = scalar_lea.vmem %s3, %s440
        %p442 = scmp.lt.s32.totalorder %s16, 3
        %s443 = scalar_select %p442, %s16, 3
        %s444 = smul.addr %s443, 8
        %s445 = scalar_lea.vmem %s4, %s444
        // Predicated region
        $region70: #{basic_conv2d.2} parent=64 // pred_check
          %p446 = pneg %p81
        $region71: #{basic_conv2d.2} parent=64 // pred_check_branch
          %448 = sbr.rel (%p446) target = $region73
        $region72: #{basic_conv2d.2} parent=64 // pred_region
          _
        $region73: #{basic_conv2d.2} parent=64 // pred_fallthru
          _
        // Predicated region
        $region74: #{basic_conv2d.2} parent=64 // pred_check
          %p449 = pneg %p107
        $region75: #{basic_conv2d.2} parent=64 // pred_check_branch
          %451 = sbr.rel (%p449) target = $region77
        $region76: #{basic_conv2d.2} parent=64 // pred_region
          _
        $region77: #{basic_conv2d.2} parent=64 // pred_fallthru
          _
        // Predicated region
        $region78: #{basic_conv2d.2} parent=64 // pred_check
          %p452 = pneg %p133
        $region79: #{basic_conv2d.2} parent=64 // pred_check_branch
          %454 = sbr.rel (%p452) target = $region81
        $region80: #{basic_conv2d.2} parent=64 // pred_region
          _
        $region81: #{basic_conv2d.2} parent=64 // pred_fallthru
          _
      $region65: #{basic_conv2d.2} parent=5 // pred_fallthru
        _
      %p455 = scmp.le.s32.totalorder 2, %s11
      // Predicated region
      $region82: #{basic_conv2d.2} parent=5 // pred_check
        %p456 = pneg %p455
      $region83: #{basic_conv2d.2} parent=5 // pred_check_branch
        %458 = sbr.rel (%p456) target = $region85
      $region84: #{basic_conv2d.2} parent=5 // pred_region
        %s459 = ssub.s32 %s11, 2
        // Predicated region
        $region86: #{basic_conv2d.2} parent=84 // pred_check
          %p460 = pneg %p87
        $region87: #{basic_conv2d.2} parent=84 // pred_check_branch
          %462 = sbr.rel (%p460) target = $region89
        $region88: #{basic_conv2d.2} parent=84 // pred_region
          %p463 = scmp.lt.s32.totalorder %s17, 3
          %s464 = scalar_select %p463, %s17, 3
          %s465 = smul.addr %s464, 8
          %s466 = scalar_lea.vmem %s2, %s465
        $region89: #{basic_conv2d.2} parent=84 // pred_fallthru
          _
        // Predicated region
        $region90: #{basic_conv2d.2} parent=84 // pred_check
          %p467 = pneg %p113
        $region91: #{basic_conv2d.2} parent=84 // pred_check_branch
          %469 = sbr.rel (%p467) target = $region93
        $region92: #{basic_conv2d.2} parent=84 // pred_region
          %p470 = scmp.lt.s32.totalorder %s17, 3
          %s471 = scalar_select %p470, %s17, 3
          %s472 = smul.addr %s471, 8
          %s473 = scalar_lea.vmem %s3, %s472
        $region93: #{basic_conv2d.2} parent=84 // pred_fallthru
          _
        // Predicated region
        $region94: #{basic_conv2d.2} parent=84 // pred_check
          %p474 = pneg %p139
        $region95: #{basic_conv2d.2} parent=84 // pred_check_branch
          %476 = sbr.rel (%p474) target = $region97
        $region96: #{basic_conv2d.2} parent=84 // pred_region
          %p477 = scmp.lt.s32.totalorder %s17, 3
          %s478 = scalar_select %p477, %s17, 3
          %s479 = smul.addr %s478, 8
          %s480 = scalar_lea.vmem %s4, %s479
        $region97: #{basic_conv2d.2} parent=84 // pred_fallthru
          _
      $region85: #{basic_conv2d.2} parent=5 // pred_fallthru
        _
    $region6: #{basic_conv2d.2} parent=1 // loop_footer
      %s15 = sadd.s32 1, %s11
    $region7: #{basic_conv2d.2} parent=1 // loop_footer_branch
      %10 = sbr.rel target = $region3
    $region8: #{basic_conv2d.2} parent=1 // loop_exit
      _

</llo_original>
